<compile_context>
chip_gen: v6e
topology: v6e:2x2x1
jax: 0.10.0
libtpu: 0.0.40
codegen_flags: <defaults>
</compile_context>

<pallas_src>
import jax
import jax.numpy as jnp
from jax import lax
from jax.experimental import pallas as pl
from jax.experimental.pallas import tpu as pltpu

# ---------------- model dimensions (small, deterministic) ----------------
F0_VOCAB = 33        # discrete f0 bins
PHONEME_VOCAB = 40   # phoneme ids
N_SPEAKER = 4
EMB = 16             # per-embedding size
SPK_EMB = 16
D_IN = EMB + EMB + SPK_EMB   # 48
HIDDEN = 32
N_CONV = 2
KSIZE = 3
OUT_CH = 2           # (f0, voiced)
OUT_PAD = 128        # lane-dense kernel output width (cols 0:2 hold f0/voiced)

B = 2                # number of sequences in the list
T = 16               # frames per sequence


# ---------------- Pallas kernel: embeddings + pre + conv stack + post --------
def predictor_kernel(f0_ids_ref, ph_ids_ref, spk_ids_ref,
                     not_first_ref, not_last_ref,
                     emb_f0_ref, emb_ph_ref, emb_spk_ref,
                     w_pre_ref, b_pre_ref,
                     w_conv_ref, b_conv_ref,
                     w_post_ref, b_post_ref,
                     o_ref):
    bt = o_ref.shape[0]                       # B*T rows, whole batch at once

    def embed(ids_ref, table_ref):
        # embedding gather fused in-kernel as a one-hot MXU matmul
        vocab = table_ref.shape[0]
        onehot = (ids_ref[...] ==
                  lax.broadcasted_iota(jnp.int32, (bt, vocab), 1)
                  ).astype(jnp.float32)                       # (bt, vocab)
        return jnp.dot(onehot, table_ref[...],
                       preferred_element_type=jnp.float32)    # (bt, EMB)

    f0_e = embed(f0_ids_ref, emb_f0_ref)
    ph_e = embed(ph_ids_ref, emb_ph_ref)
    sp_e = embed(spk_ids_ref, emb_spk_ref)

    # pre linear + ReLU (w_pre split into the 3 input row-blocks -> no concat)
    h = (jnp.dot(f0_e, w_pre_ref[0], preferred_element_type=jnp.float32)
         + jnp.dot(ph_e, w_pre_ref[1], preferred_element_type=jnp.float32)
         + jnp.dot(sp_e, w_pre_ref[2], preferred_element_type=jnp.float32)
         + b_pre_ref[...])
    h = jnp.maximum(h, 0.0)                                   # (bt, HIDDEN)

    not_first = not_first_ref[...]                            # (bt, 1) 0/1 mask
    not_last = not_last_ref[...]                              # (bt, 1) 0/1 mask
    zero_row = jnp.zeros((1, HIDDEN), jnp.float32)

    # conv1d stack (k=3, zero padding at each sequence boundary);
    # the 3 taps are fused into a single K=3*HIDDEN=96 matmul per layer.
    for l in range(N_CONV):
        h_prev = jnp.concatenate([zero_row, h[:-1, :]], axis=0) * not_first
        h_next = jnp.concatenate([h[1:, :], zero_row], axis=0) * not_last
        taps = jnp.concatenate([h_prev, h, h_next], axis=-1)  # (bt, 96) <=1 lane tile
        conv = (jnp.dot(taps, w_conv_ref[l],
                        preferred_element_type=jnp.float32) + b_conv_ref[l])
        h = jnp.maximum(conv, 0.0)

    # post linear, zero-padded to 128 output lanes -> dense (unmasked) stores
    o_ref[...] = (jnp.dot(h, w_post_ref[...],
                          preferred_element_type=jnp.float32) + b_post_ref[...])


def predictor_pallas(f0_ids, ph_ids, spk_ids, params):
    """f0_ids/ph_ids/spk_ids: (B*T,) int32 -> (B*T, OUT_PAD) float32."""
    bt = f0_ids.shape[0]

    # boundary masks over the flattened row axis (compile-time constants)
    ridx = jnp.arange(bt, dtype=jnp.int32) % T
    not_first = (ridx != 0).astype(jnp.float32)[:, None]      # (bt, 1)
    not_last = (ridx != T - 1).astype(jnp.float32)[:, None]   # (bt, 1)

    # trace-time parameter re-layouts (tiny, done by XLA outside the kernel)
    w_pre3 = params["w_pre"].reshape(3, EMB, HIDDEN)                      # (3,16,32)
    w_conv_flat = params["w_conv"].reshape(N_CONV, KSIZE * HIDDEN, HIDDEN)  # (2,96,32)
    w_post_pad = jnp.zeros((HIDDEN, OUT_PAD), jnp.float32).at[:, :OUT_CH].set(
        params["w_post"])
    b_post_pad = jnp.zeros((1, OUT_PAD), jnp.float32).at[:, :OUT_CH].set(
        params["b_post"])

    vmem = lambda: pl.BlockSpec(memory_space=pltpu.MemorySpace.VMEM)

    return pl.pallas_call(
        predictor_kernel,
        out_shape=jax.ShapeDtypeStruct((bt, OUT_PAD), jnp.float32),
        in_specs=[vmem() for _ in range(14)],
        out_specs=vmem(),
    )(f0_ids[:, None].astype(jnp.int32),
      ph_ids[:, None].astype(jnp.int32),
      spk_ids[:, None].astype(jnp.int32),
      not_first, not_last,
      params["emb_f0"], params["emb_ph"], params["emb_spk"],
      w_pre3, params["b_pre"],
      w_conv_flat, params["b_conv"],
      w_post_pad, b_post_pad)


# ---------------- Generator.forward equivalent ----------------
def generator_forward(discrete_f0_list, phoneme_list, speaker_id, params):
    b = len(discrete_f0_list)
    t = discrete_f0_list[0].shape[0]
    # TODO(synk): real predictor.inference supports ragged per-sequence lengths;
    # here all sequences share length T (pad/mask would be needed for ragged).
    f0_ids = jnp.stack(discrete_f0_list).reshape(-1)                  # (B*T,)
    ph_ids = jnp.stack(phoneme_list).reshape(-1)                      # (B*T,)
    spk_ids = jnp.repeat(jnp.asarray(speaker_id, dtype=jnp.int32), t)  # (B*T,)

    out_pad = predictor_pallas(f0_ids, ph_ids, spk_ids, params)       # (B*T, 128)
    out = out_pad[:, :OUT_CH].reshape(b, t, OUT_CH)                   # (B, T, 2)
    outputs = [{"f0": out[i, :, 0], "voiced": out[i, :, 1]} for i in range(b)]
    return outputs, out


# ---------------- plain-JAX reference for verification ----------------
def predictor_ref(f0_ids_bt, ph_ids_bt, speaker_id, params):
    b, t = f0_ids_bt.shape
    f0_e = params["emb_f0"][f0_ids_bt]                                # (B, T, EMB)
    ph_e = params["emb_ph"][ph_ids_bt]                                # (B, T, EMB)
    spk = jnp.broadcast_to(params["emb_spk"][speaker_id][:, None, :],
                           (b, t, SPK_EMB))
    x = jnp.concatenate([f0_e, ph_e, spk], axis=-1)                   # (B, T, 48)
    h = jnp.maximum(x @ params["w_pre"] + params["b_pre"], 0.0)
    for l in range(N_CONV):
        w = params["w_conv"][l]
        bc = params["b_conv"][l]
        zeros = jnp.zeros_like(h[:, :1, :])
        h_prev = jnp.concatenate([zeros, h[:, :-1, :]], axis=1)
        h_next = jnp.concatenate([h[:, 1:, :], zeros], axis=1)
        h = jnp.maximum(h_prev @ w[0] + h @ w[1] + h_next @ w[2] + bc, 0.0)
    return h @ params["w_post"] + params["b_post"]                    # (B, T, 2)


# ---------------- deterministic parameter init ----------------
def init_params(key):
    ks = jax.random.split(key, 9)
    s = 0.1
    return {
        "emb_f0": s * jax.random.normal(ks[0], (F0_VOCAB, EMB), jnp.float32),
        "emb_ph": s * jax.random.normal(ks[1], (PHONEME_VOCAB, EMB), jnp.float32),
        "emb_spk": s * jax.random.normal(ks[2], (N_SPEAKER, SPK_EMB), jnp.float32),
        "w_pre": s * jax.random.normal(ks[3], (D_IN, HIDDEN), jnp.float32),
        "b_pre": s * jax.random.normal(ks[4], (1, HIDDEN), jnp.float32),
        "w_conv": s * jax.random.normal(ks[5], (N_CONV, KSIZE, HIDDEN, HIDDEN), jnp.float32),
        "b_conv": s * jax.random.normal(ks[6], (N_CONV, 1, HIDDEN), jnp.float32),
        "w_post": s * jax.random.normal(ks[7], (HIDDEN, OUT_CH), jnp.float32),
        "b_post": s * jax.random.normal(ks[8], (1, OUT_CH), jnp.float32),
    }


if __name__ == "__main__":
    root = jax.random.PRNGKey(0)
    pkey, dkey = jax.random.split(root)
    params = init_params(pkey)

    dkeys = jax.random.split(dkey, 2 * B + 1)
    # distinct keys per sequence so the cross-sequence boundary handling is exercised
    discrete_f0_list = [jax.random.randint(dkeys[i], (T,), 0, F0_VOCAB, dtype=jnp.int32)
                        for i in range(B)]
    phoneme_list = [jax.random.randint(dkeys[B + i], (T,), 0, PHONEME_VOCAB, dtype=jnp.int32)
                    for i in range(B)]
    speaker_id = jax.random.randint(dkeys[2 * B], (B,), 0, N_SPEAKER, dtype=jnp.int32)

    outputs, out_pallas = generator_forward(
        discrete_f0_list, phoneme_list, speaker_id, params)
    out_pallas = jax.block_until_ready(out_pallas)

    # verify against pure-JAX reference (tolerance covers MXU-f32 kernel vs
    # XLA default-precision reference matmuls)
    out_ref = predictor_ref(jnp.stack(discrete_f0_list), jnp.stack(phoneme_list),
                            speaker_id, params)
    assert out_pallas.shape == (B, T, OUT_CH)
    max_err = float(jnp.max(jnp.abs(out_pallas - out_ref)))
    assert max_err < 5e-3, f"mismatch vs reference: max_err={max_err}"
    assert outputs[0]["f0"].shape == (T,) and outputs[0]["voiced"].shape == (T,)

    # NOTE: for benchmarking, use an xprof trace (sum XLA Ops, min over runs);
    # wall-clock timing of this sub-microsecond kernel in isolation is meaningless.
    print("KERNEL_OK")
</pallas_src>

<mosaic_0001>
module attributes {stable_mosaic.version = 11 : i64} {
  func.func @predictor_kernel(%arg0: memref<32x1xi32, #tpu.memory_space<vmem>>, %arg1: memref<32x1xi32, #tpu.memory_space<vmem>>, %arg2: memref<32x1xi32, #tpu.memory_space<vmem>>, %arg3: memref<32x1xf32, #tpu.memory_space<vmem>>, %arg4: memref<32x1xf32, #tpu.memory_space<vmem>>, %arg5: memref<33x16xf32, #tpu.memory_space<vmem>>, %arg6: memref<40x16xf32, #tpu.memory_space<vmem>>, %arg7: memref<4x16xf32, #tpu.memory_space<vmem>>, %arg8: memref<3x16x32xf32, #tpu.memory_space<vmem>>, %arg9: memref<1x32xf32, #tpu.memory_space<vmem>>, %arg10: memref<2x96x32xf32, #tpu.memory_space<vmem>>, %arg11: memref<2x1x32xf32, #tpu.memory_space<vmem>>, %arg12: memref<32x128xf32, #tpu.memory_space<vmem>>, %arg13: memref<1x128xf32, #tpu.memory_space<vmem>>, %arg14: memref<32x128xf32, #tpu.memory_space<vmem>>) attributes {dimension_semantics = [], scalar_prefetch = 0 : i64, scratch_operands = 0 : i64, tpu.core_type = #tpu.core_type<tc>} {
    %c0 = arith.constant 0 : index
    %c0_0 = arith.constant 0 : index
    %0 = vector.load %arg0[%c0, %c0_0] : memref<32x1xi32, #tpu.memory_space<vmem>>, vector<32x1xi32>
    %1 = tpu.iota {dimensions = array<i32: 1>} : vector<32x33xi32>
    %2 = vector.broadcast %0 : vector<32x1xi32> to vector<32x33xi32>
    %3 = arith.cmpi eq, %2, %1 : vector<32x33xi32>
    %4 = arith.extui %3 : vector<32x33xi1> to vector<32x33xi32>
    %5 = arith.sitofp %4 : vector<32x33xi32> to vector<32x33xf32>
    %c0_1 = arith.constant 0 : index
    %c0_2 = arith.constant 0 : index
    %6 = vector.load %arg5[%c0_1, %c0_2] : memref<33x16xf32, #tpu.memory_space<vmem>>, vector<33x16xf32>
    %cst = arith.constant dense<0.000000e+00> : vector<32x16xf32>
    %7 = tpu.matmul %5, %6, %cst {dimension_numbers = #tpu.dot_dimension_numbers<[1], [0], [0], [1], [0, 0, 1, 1], [], []>} : vector<32x33xf32>, vector<33x16xf32>, vector<32x16xf32> -> vector<32x16xf32>
    %c0_3 = arith.constant 0 : index
    %c0_4 = arith.constant 0 : index
    %8 = vector.load %arg1[%c0_3, %c0_4] : memref<32x1xi32, #tpu.memory_space<vmem>>, vector<32x1xi32>
    %9 = tpu.iota {dimensions = array<i32: 1>} : vector<32x40xi32>
    %10 = vector.broadcast %8 : vector<32x1xi32> to vector<32x40xi32>
    %11 = arith.cmpi eq, %10, %9 : vector<32x40xi32>
    %12 = arith.extui %11 : vector<32x40xi1> to vector<32x40xi32>
    %13 = arith.sitofp %12 : vector<32x40xi32> to vector<32x40xf32>
    %c0_5 = arith.constant 0 : index
    %c0_6 = arith.constant 0 : index
    %14 = vector.load %arg6[%c0_5, %c0_6] : memref<40x16xf32, #tpu.memory_space<vmem>>, vector<40x16xf32>
    %cst_7 = arith.constant dense<0.000000e+00> : vector<32x16xf32>
    %15 = tpu.matmul %13, %14, %cst_7 {dimension_numbers = #tpu.dot_dimension_numbers<[1], [0], [0], [1], [0, 0, 1, 1], [], []>} : vector<32x40xf32>, vector<40x16xf32>, vector<32x16xf32> -> vector<32x16xf32>
    %c0_8 = arith.constant 0 : index
    %c0_9 = arith.constant 0 : index
    %16 = vector.load %arg2[%c0_8, %c0_9] : memref<32x1xi32, #tpu.memory_space<vmem>>, vector<32x1xi32>
    %17 = tpu.iota {dimensions = array<i32: 1>} : vector<32x4xi32>
    %18 = vector.broadcast %16 : vector<32x1xi32> to vector<32x4xi32>
    %19 = arith.cmpi eq, %18, %17 : vector<32x4xi32>
    %20 = arith.extui %19 : vector<32x4xi1> to vector<32x4xi32>
    %21 = arith.sitofp %20 : vector<32x4xi32> to vector<32x4xf32>
    %c0_10 = arith.constant 0 : index
    %c0_11 = arith.constant 0 : index
    %22 = vector.load %arg7[%c0_10, %c0_11] : memref<4x16xf32, #tpu.memory_space<vmem>>, vector<4x16xf32>
    %cst_12 = arith.constant dense<0.000000e+00> : vector<32x16xf32>
    %23 = tpu.matmul %21, %22, %cst_12 {dimension_numbers = #tpu.dot_dimension_numbers<[1], [0], [0], [1], [0, 0, 1, 1], [], []>} : vector<32x4xf32>, vector<4x16xf32>, vector<32x16xf32> -> vector<32x16xf32>
    %c0_13 = arith.constant 0 : index
    %c0_14 = arith.constant 0 : index
    %c0_15 = arith.constant 0 : index
    %24 = vector.load %arg8[%c0_13, %c0_14, %c0_15] : memref<3x16x32xf32, #tpu.memory_space<vmem>>, vector<1x16x32xf32>
    %25 = vector.shape_cast %24 : vector<1x16x32xf32> to vector<16x32xf32>
    %cst_16 = arith.constant dense<0.000000e+00> : vector<32x32xf32>
    %26 = tpu.matmul %7, %25, %cst_16 {dimension_numbers = #tpu.dot_dimension_numbers<[1], [0], [0], [1], [0, 0, 1, 1], [], []>} : vector<32x16xf32>, vector<16x32xf32>, vector<32x32xf32> -> vector<32x32xf32>
    %c1 = arith.constant 1 : index
    %c0_17 = arith.constant 0 : index
    %c0_18 = arith.constant 0 : index
    %27 = vector.load %arg8[%c1, %c0_17, %c0_18] : memref<3x16x32xf32, #tpu.memory_space<vmem>>, vector<1x16x32xf32>
    %28 = vector.shape_cast %27 : vector<1x16x32xf32> to vector<16x32xf32>
    %cst_19 = arith.constant dense<0.000000e+00> : vector<32x32xf32>
    %29 = tpu.matmul %15, %28, %cst_19 {dimension_numbers = #tpu.dot_dimension_numbers<[1], [0], [0], [1], [0, 0, 1, 1], [], []>} : vector<32x16xf32>, vector<16x32xf32>, vector<32x32xf32> -> vector<32x32xf32>
    %30 = arith.addf %26, %29 : vector<32x32xf32>
    %c2 = arith.constant 2 : index
    %c0_20 = arith.constant 0 : index
    %c0_21 = arith.constant 0 : index
    %31 = vector.load %arg8[%c2, %c0_20, %c0_21] : memref<3x16x32xf32, #tpu.memory_space<vmem>>, vector<1x16x32xf32>
    %32 = vector.shape_cast %31 : vector<1x16x32xf32> to vector<16x32xf32>
    %cst_22 = arith.constant dense<0.000000e+00> : vector<32x32xf32>
    %33 = tpu.matmul %23, %32, %cst_22 {dimension_numbers = #tpu.dot_dimension_numbers<[1], [0], [0], [1], [0, 0, 1, 1], [], []>} : vector<32x16xf32>, vector<16x32xf32>, vector<32x32xf32> -> vector<32x32xf32>
    %34 = arith.addf %30, %33 : vector<32x32xf32>
    %c0_23 = arith.constant 0 : index
    %c0_24 = arith.constant 0 : index
    %35 = vector.load %arg9[%c0_23, %c0_24] : memref<1x32xf32, #tpu.memory_space<vmem>>, vector<1x32xf32>
    %36 = vector.broadcast %35 : vector<1x32xf32> to vector<32x32xf32>
    %37 = arith.addf %34, %36 : vector<32x32xf32>
    %cst_25 = arith.constant 0.000000e+00 : f32
    %38 = vector.broadcast %cst_25 : f32 to vector<32x32xf32>
    %39 = arith.maximumf %37, %38 : vector<32x32xf32>
    %c0_26 = arith.constant 0 : index
    %c0_27 = arith.constant 0 : index
    %40 = vector.load %arg3[%c0_26, %c0_27] : memref<32x1xf32, #tpu.memory_space<vmem>>, vector<32x1xf32>
    %c0_28 = arith.constant 0 : index
    %c0_29 = arith.constant 0 : index
    %41 = vector.load %arg4[%c0_28, %c0_29] : memref<32x1xf32, #tpu.memory_space<vmem>>, vector<32x1xf32>
    %cst_30 = arith.constant 0.000000e+00 : f32
    %42 = vector.broadcast %cst_30 : f32 to vector<1x32xf32>
    %43 = vector.extract_strided_slice %39 {offsets = [0, 0], sizes = [31, 32], strides = [1, 1]} : vector<32x32xf32> to vector<31x32xf32>
    %44 = tpu.concatenate %42, %43 in 0 : vector<1x32xf32>, vector<31x32xf32> -> vector<32x32xf32>
    %45 = vector.broadcast %40 : vector<32x1xf32> to vector<32x32xf32>
    %46 = arith.mulf %44, %45 : vector<32x32xf32>
    %47 = vector.extract_strided_slice %39 {offsets = [1, 0], sizes = [31, 32], strides = [1, 1]} : vector<32x32xf32> to vector<31x32xf32>
    %48 = tpu.concatenate %47, %42 in 0 : vector<31x32xf32>, vector<1x32xf32> -> vector<32x32xf32>
    %49 = vector.broadcast %41 : vector<32x1xf32> to vector<32x32xf32>
    %50 = arith.mulf %48, %49 : vector<32x32xf32>
    %51 = tpu.concatenate %46, %39, %50 in 1 : vector<32x32xf32>, vector<32x32xf32>, vector<32x32xf32> -> vector<32x96xf32>
    %c0_31 = arith.constant 0 : index
    %c0_32 = arith.constant 0 : index
    %c0_33 = arith.constant 0 : index
    %52 = vector.load %arg10[%c0_31, %c0_32, %c0_33] : memref<2x96x32xf32, #tpu.memory_space<vmem>>, vector<1x96x32xf32>
    %53 = vector.shape_cast %52 : vector<1x96x32xf32> to vector<96x32xf32>
    %cst_34 = arith.constant dense<0.000000e+00> : vector<32x32xf32>
    %54 = tpu.matmul %51, %53, %cst_34 {dimension_numbers = #tpu.dot_dimension_numbers<[1], [0], [0], [1], [0, 0, 1, 1], [], []>} : vector<32x96xf32>, vector<96x32xf32>, vector<32x32xf32> -> vector<32x32xf32>
    %c0_35 = arith.constant 0 : index
    %c0_36 = arith.constant 0 : index
    %c0_37 = arith.constant 0 : index
    %55 = vector.load %arg11[%c0_35, %c0_36, %c0_37] : memref<2x1x32xf32, #tpu.memory_space<vmem>>, vector<1x1x32xf32>
    %56 = vector.shape_cast %55 : vector<1x1x32xf32> to vector<1x32xf32>
    %57 = vector.broadcast %56 : vector<1x32xf32> to vector<32x32xf32>
    %58 = arith.addf %54, %57 : vector<32x32xf32>
    %cst_38 = arith.constant 0.000000e+00 : f32
    %59 = vector.broadcast %cst_38 : f32 to vector<32x32xf32>
    %60 = arith.maximumf %58, %59 : vector<32x32xf32>
    %61 = vector.extract_strided_slice %60 {offsets = [0, 0], sizes = [31, 32], strides = [1, 1]} : vector<32x32xf32> to vector<31x32xf32>
    %62 = tpu.concatenate %42, %61 in 0 : vector<1x32xf32>, vector<31x32xf32> -> vector<32x32xf32>
    %63 = vector.broadcast %40 : vector<32x1xf32> to vector<32x32xf32>
    %64 = arith.mulf %62, %63 : vector<32x32xf32>
    %65 = vector.extract_strided_slice %60 {offsets = [1, 0], sizes = [31, 32], strides = [1, 1]} : vector<32x32xf32> to vector<31x32xf32>
    %66 = tpu.concatenate %65, %42 in 0 : vector<31x32xf32>, vector<1x32xf32> -> vector<32x32xf32>
    %67 = vector.broadcast %41 : vector<32x1xf32> to vector<32x32xf32>
    %68 = arith.mulf %66, %67 : vector<32x32xf32>
    %69 = tpu.concatenate %64, %60, %68 in 1 : vector<32x32xf32>, vector<32x32xf32>, vector<32x32xf32> -> vector<32x96xf32>
    %c1_39 = arith.constant 1 : index
    %c0_40 = arith.constant 0 : index
    %c0_41 = arith.constant 0 : index
    %70 = vector.load %arg10[%c1_39, %c0_40, %c0_41] : memref<2x96x32xf32, #tpu.memory_space<vmem>>, vector<1x96x32xf32>
    %71 = vector.shape_cast %70 : vector<1x96x32xf32> to vector<96x32xf32>
    %cst_42 = arith.constant dense<0.000000e+00> : vector<32x32xf32>
    %72 = tpu.matmul %69, %71, %cst_42 {dimension_numbers = #tpu.dot_dimension_numbers<[1], [0], [0], [1], [0, 0, 1, 1], [], []>} : vector<32x96xf32>, vector<96x32xf32>, vector<32x32xf32> -> vector<32x32xf32>
    %c1_43 = arith.constant 1 : index
    %c0_44 = arith.constant 0 : index
    %c0_45 = arith.constant 0 : index
    %73 = vector.load %arg11[%c1_43, %c0_44, %c0_45] : memref<2x1x32xf32, #tpu.memory_space<vmem>>, vector<1x1x32xf32>
    %74 = vector.shape_cast %73 : vector<1x1x32xf32> to vector<1x32xf32>
    %75 = vector.broadcast %74 : vector<1x32xf32> to vector<32x32xf32>
    %76 = arith.addf %72, %75 : vector<32x32xf32>
    %cst_46 = arith.constant 0.000000e+00 : f32
    %77 = vector.broadcast %cst_46 : f32 to vector<32x32xf32>
    %78 = arith.maximumf %76, %77 : vector<32x32xf32>
    %c0_47 = arith.constant 0 : index
    %c0_48 = arith.constant 0 : index
    %79 = vector.load %arg12[%c0_47, %c0_48] : memref<32x128xf32, #tpu.memory_space<vmem>>, vector<32x128xf32>
    %cst_49 = arith.constant dense<0.000000e+00> : vector<32x128xf32>
    %80 = tpu.matmul %78, %79, %cst_49 {dimension_numbers = #tpu.dot_dimension_numbers<[1], [0], [0], [1], [0, 0, 1, 1], [], []>} : vector<32x32xf32>, vector<32x128xf32>, vector<32x128xf32> -> vector<32x128xf32>
    %c0_50 = arith.constant 0 : index
    %c0_51 = arith.constant 0 : index
    %81 = vector.load %arg13[%c0_50, %c0_51] : memref<1x128xf32, #tpu.memory_space<vmem>>, vector<1x128xf32>
    %82 = vector.broadcast %81 : vector<1x128xf32> to vector<32x128xf32>
    %83 = arith.addf %80, %82 : vector<32x128xf32>
    %c0_52 = arith.constant 0 : index
    %c0_53 = arith.constant 0 : index
    %84 = vector.load %arg14[%c0_52, %c0_53] : memref<32x128xf32, #tpu.memory_space<vmem>>, vector<32x128xf32>
    tpu.vector_store %arg14[%c0_52, %c0_53], %83 {strides = array<i32>} : memref<32x128xf32, #tpu.memory_space<vmem>>, vector<32x128xf32>,
    return
  }
}

</mosaic_0001>

<llo_original>
// kernel: tpu_custom_call.1
$region0: #{tpu_custom_call.1}
  #allocation0 [shape = 'u32[]', space=smem, size = 0x4, offset = 0x4, fixed_abs, tag = 'smem constant byte address 0x4 - core index']
  #allocation1 [shape = 'u32[144,128]{1,0:T(1,128)}', space=vmem, size = 0x12000, scoped, tag = 'internal scratch']
  %s0 = inlined_call_operand.vmem [shape: s32[32,1], index: 0, kind: input, shape index: {}]
  %s1 = inlined_call_operand.vmem [shape: s32[32,1], index: 1, kind: input, shape index: {}]
  %s2 = inlined_call_operand.vmem [shape: s32[32,1], index: 2, kind: input, shape index: {}]
  %s3 = inlined_call_operand.vmem [shape: f32[32,1], index: 3, kind: input, shape index: {}]
  %s4 = inlined_call_operand.vmem [shape: f32[32,1], index: 4, kind: input, shape index: {}]
  %s5 = inlined_call_operand.vmem [shape: f32[33,16], index: 5, kind: input, shape index: {}]
  %s6 = inlined_call_operand.vmem [shape: f32[40,16], index: 6, kind: input, shape index: {}]
  %s7 = inlined_call_operand.vmem [shape: f32[4,16], index: 7, kind: input, shape index: {}]
  %s8 = inlined_call_operand.vmem [shape: f32[3,16,32], index: 8, kind: input, shape index: {}]
  %s9 = inlined_call_operand.vmem [shape: f32[1,32], index: 9, kind: input, shape index: {}]
  %s10 = inlined_call_operand.vmem [shape: f32[2,96,32], index: 10, kind: input, shape index: {}]
  %s11 = inlined_call_operand.vmem [shape: f32[2,1,32], index: 11, kind: input, shape index: {}]
  %s12 = inlined_call_operand.vmem [shape: f32[32,128], index: 12, kind: input, shape index: {}]
  %s13 = inlined_call_operand.vmem [shape: f32[1,128], index: 13, kind: input, shape index: {}]
  %s14 = inlined_call_operand.hbm [shape: f32[32,128], index: 14, kind: output, shape index: {}]
  %s15 = sld [smem:[#allocation0]]
  $region66: #{tpu_custom_call.1} parent=0
    _
  %s17 = ssub.s32 1, %s15
  %s18 = scalar_select 0, %s17, %s15
  $region1: #{tpu_custom_call.1} parent=0
    #allocation2 [shape = 'u8[16384]{0}', space=vmem, size = 0x4000, scoped, tag = 'output window, operand 0, single buffered']
    #allocation3 [shape = 's32[1]{0}', space=sflag, size = 0x4, scoped, tag = 'scoped memory for tpu_custom_call.1']
    %19 = vsyncpa [#allocation3], 0
    // Predicated region
    $region2: #{tpu_custom_call.1} parent=1 // pred_check
      _
    $region3: #{tpu_custom_call.1} parent=1 // pred_check_branch
      %21 = sbr.rel (0) target = $region5
    $region4: #{tpu_custom_call.1} parent=1 // pred_region
      _
    $region5: #{tpu_custom_call.1} parent=1 // pred_fallthru
      _
    // Predicated region
    $region6: #{tpu_custom_call.1} parent=1 // pred_check
      _
    $region7: #{tpu_custom_call.1} parent=1 // pred_check_branch
      %23 = sbr.rel (0) target = $region9
    $region8: #{tpu_custom_call.1} parent=1 // pred_region
      _
    $region9: #{tpu_custom_call.1} parent=1 // pred_fallthru
      _
    // Predicated region
    $region10: #{tpu_custom_call.1} parent=1 // pred_check
      _
    $region11: #{tpu_custom_call.1} parent=1 // pred_check_branch
      %25 = sbr.rel (0) target = $region13
    $region12: #{tpu_custom_call.1} parent=1 // pred_region
      _
    $region13: #{tpu_custom_call.1} parent=1 // pred_fallthru
      _
    // Predicated region
    $region14: #{tpu_custom_call.1} parent=1 // pred_check
      _
    $region15: #{tpu_custom_call.1} parent=1 // pred_check_branch
      %27 = sbr.rel (0) target = $region17
    $region16: #{tpu_custom_call.1} parent=1 // pred_region
      _
    $region17: #{tpu_custom_call.1} parent=1 // pred_fallthru
      _
    // Predicated region
    $region18: #{tpu_custom_call.1} parent=1 // pred_check
      _
    $region19: #{tpu_custom_call.1} parent=1 // pred_check_branch
      %29 = sbr.rel (0) target = $region21
    $region20: #{tpu_custom_call.1} parent=1 // pred_region
      _
    $region21: #{tpu_custom_call.1} parent=1 // pred_fallthru
      _
    // Predicated region
    $region22: #{tpu_custom_call.1} parent=1 // pred_check
      _
    $region23: #{tpu_custom_call.1} parent=1 // pred_check_branch
      %31 = sbr.rel (0) target = $region25
    $region24: #{tpu_custom_call.1} parent=1 // pred_region
      _
    $region25: #{tpu_custom_call.1} parent=1 // pred_fallthru
      _
    // Predicated region
    $region26: #{tpu_custom_call.1} parent=1 // pred_check
      _
    $region27: #{tpu_custom_call.1} parent=1 // pred_check_branch
      %33 = sbr.rel (0) target = $region29
    $region28: #{tpu_custom_call.1} parent=1 // pred_region
      _
    $region29: #{tpu_custom_call.1} parent=1 // pred_fallthru
      _
    // Predicated region
    $region30: #{tpu_custom_call.1} parent=1 // pred_check
      _
    $region31: #{tpu_custom_call.1} parent=1 // pred_check_branch
      %35 = sbr.rel (0) target = $region33
    $region32: #{tpu_custom_call.1} parent=1 // pred_region
      _
    $region33: #{tpu_custom_call.1} parent=1 // pred_fallthru
      _
    // Predicated region
    $region34: #{tpu_custom_call.1} parent=1 // pred_check
      _
    $region35: #{tpu_custom_call.1} parent=1 // pred_check_branch
      %37 = sbr.rel (0) target = $region37
    $region36: #{tpu_custom_call.1} parent=1 // pred_region
      _
    $region37: #{tpu_custom_call.1} parent=1 // pred_fallthru
      _
    // Predicated region
    $region38: #{tpu_custom_call.1} parent=1 // pred_check
      _
    $region39: #{tpu_custom_call.1} parent=1 // pred_check_branch
      %39 = sbr.rel (0) target = $region41
    $region40: #{tpu_custom_call.1} parent=1 // pred_region
      _
    $region41: #{tpu_custom_call.1} parent=1 // pred_fallthru
      _
    // Predicated region
    $region42: #{tpu_custom_call.1} parent=1 // pred_check
      _
    $region43: #{tpu_custom_call.1} parent=1 // pred_check_branch
      %41 = sbr.rel (0) target = $region45
    $region44: #{tpu_custom_call.1} parent=1 // pred_region
      _
    $region45: #{tpu_custom_call.1} parent=1 // pred_fallthru
      _
    // Predicated region
    $region46: #{tpu_custom_call.1} parent=1 // pred_check
      _
    $region47: #{tpu_custom_call.1} parent=1 // pred_check_branch
      %43 = sbr.rel (0) target = $region49
    $region48: #{tpu_custom_call.1} parent=1 // pred_region
      _
    $region49: #{tpu_custom_call.1} parent=1 // pred_fallthru
      _
    // Predicated region
    $region50: #{tpu_custom_call.1} parent=1 // pred_check
      _
    $region51: #{tpu_custom_call.1} parent=1 // pred_check_branch
      %45 = sbr.rel (0) target = $region53
    $region52: #{tpu_custom_call.1} parent=1 // pred_region
      _
    $region53: #{tpu_custom_call.1} parent=1 // pred_fallthru
      _
    // Predicated region
    $region54: #{tpu_custom_call.1} parent=1 // pred_check
      _
    $region55: #{tpu_custom_call.1} parent=1 // pred_check_branch
      %47 = sbr.rel (0) target = $region57
    $region56: #{tpu_custom_call.1} parent=1 // pred_region
      _
    $region57: #{tpu_custom_call.1} parent=1 // pred_fallthru
      _
    %v48 = vld [vmem:[%s0] sm:$0xff]
    %v49 = vld [vmem:[%s0 + $0x8] sm:$0xff]
    %v50 = vld [vmem:[%s0 + $0x10] sm:$0xff]
    %v51 = vld [vmem:[%s0 + $0x18] sm:$0xff]
    %v52 = vlaneseq
    %v53 = vand.u32 %v52, 127
    %54 = vset.pattern.permute.xlu0 0
    %55 = vperm.xlu0 %54, %v48
    %v56 = vpop.permute.xlu0 %55
    %57 = vset.pattern.permute.xlu0 0
    %58 = vperm.xlu0 %57, %v49
    %v59 = vpop.permute.xlu0 %58
    %60 = vset.pattern.permute.xlu0 0
    %61 = vperm.xlu0 %60, %v50
    %v62 = vpop.permute.xlu0 %61
    %63 = vset.pattern.permute.xlu0 0
    %64 = vperm.xlu0 %63, %v51
    %v65 = vpop.permute.xlu0 %64
    %vm66 = vcmp.eq.s32.totalorder %v56, %v53
    %vm67 = vcmp.eq.s32.totalorder %v59, %v53
    %vm68 = vcmp.eq.s32.totalorder %v62, %v53
    %vm69 = vcmp.eq.s32.totalorder %v65, %v53
    %v70 = vsel %vm66, 1, 0
    %v71 = vsel %vm67, 1, 0
    %v72 = vsel %vm68, 1, 0
    %v73 = vsel %vm69, 1, 0
    %v74 = vcvt.s32.f32 %v70
    %v75 = vcvt.s32.f32 %v71
    %v76 = vcvt.s32.f32 %v72
    %v77 = vcvt.s32.f32 %v73
    %v78 = vld [vmem:[%s5] sm:$0xff]
    %v79 = vld [vmem:[%s5 + $0x8] sm:$0xff]
    %v80 = vld [vmem:[%s5 + $0x10] sm:$0xff]
    %v81 = vld [vmem:[%s5 + $0x18] sm:$0xff]
    %v82 = vld [vmem:[%s5 + $0x20] sm:$0x1]
    %vm83 = vcmask 269312
    %v85 = vsel %vm83, %v74, 0
    %v88 = vsel %vm83, %v75, 0
    %v91 = vsel %vm83, %v76, 0
    %v94 = vsel %vm83, %v77, 0
    %vm96 = vcmask 1040384
    %v98 = vsel %vm96, %v82, 0
    %100 = vmatprep.subr.mxu0 0.0
    %101 = vmatpush1.msra.mxu0 0.0
    %102 = vmatprep.subr.mxu0 0.0
    %103 = vmatpush1.msra.mxu0 0.0
    %104 = vmatprep.subr.mxu0 0.0
    %105 = vmatpush1.msra.mxu0 0.0
    %106 = vmatprep.subr.mxu0 0.0
    %107 = vmatpush1.msra.mxu0 0.0
    %108 = vmatprep.subr.mxu0 0.0
    %109 = vmatpush1.msra.mxu0 0.0
    %110 = vmatprep.subr.mxu0 0.0
    %111 = vmatpush1.msra.mxu0 0.0
    %112 = vmatprep.subr.mxu0 0.0
    %113 = vmatpush1.msra.mxu0 0.0
    %114 = vmatprep.subr.mxu0 0.0
    %115 = vmatpush1.msra.mxu0 0.0
    %116 = vmatprep.subr.mxu0 0.0
    %117 = vmatpush1.msra.mxu0 0.0
    %118 = vmatprep.subr.mxu0 0.0
    %119 = vmatpush1.msra.mxu0 0.0
    %120 = vmatprep.subr.mxu0 0.0
    %121 = vmatpush1.msra.mxu0 0.0
    %122 = vmatprep.subr.mxu0 0.0
    %123 = vmatpush1.msra.mxu0 %v98
    %124 = vmatprep.subr.mxu0 0.0
    %125 = vmatpush1.msra.mxu0 %v81
    %126 = vmatprep.subr.mxu0 0.0
    %127 = vmatpush1.msra.mxu0 %v80
    %128 = vmatprep.subr.mxu0 0.0
    %129 = vmatpush1.msra.mxu0 %v79
    %130 = vmatprep.subr.mxu0 0.0
    %131 = vmatpush1.msra.mxu0 %v78
    %132 = vmatprep.subr.mxu0 0.0
    %133 = vmatpush2.msra.mxu0 0.0
    %134 = vmatprep.subr.mxu0 0.0
    %135 = vmatpush2.msra.mxu0 0.0
    %136 = vmatprep.subr.mxu0 0.0
    %137 = vmatpush2.msra.mxu0 0.0
    %138 = vmatprep.subr.mxu0 0.0
    %139 = vmatpush2.msra.mxu0 0.0
    %140 = vmatprep.subr.mxu0 0.0
    %141 = vmatpush2.msra.mxu0 0.0
    %142 = vmatprep.subr.mxu0 0.0
    %143 = vmatpush2.msra.mxu0 0.0
    %144 = vmatprep.subr.mxu0 0.0
    %145 = vmatpush2.msra.mxu0 0.0
    %146 = vmatprep.subr.mxu0 0.0
    %147 = vmatpush2.msra.mxu0 0.0
    %148 = vmatprep.subr.mxu0 0.0
    %149 = vmatpush2.msra.mxu0 0.0
    %150 = vmatprep.subr.mxu0 0.0
    %151 = vmatpush2.msra.mxu0 0.0
    %152 = vmatprep.subr.mxu0 0.0
    %153 = vmatpush2.msra.mxu0 0.0
    %154 = vmatprep.subr.mxu0 0.0
    %155 = vmatpush2.msra.mxu0 0.0
    %156 = vmatprep.subr.mxu0 0.0
    %157 = vmatpush2.msra.mxu0 0.0
    %158 = vmatprep.subr.mxu0 0.0
    %159 = vmatpush2.msra.mxu0 0.0
    %160 = vmatprep.subr.mxu0 0.0
    %161 = vmatpush2.msra.mxu0 0.0
    %162 = vmatprep.subr.mxu0 0.0
    %163 = vmatpush2.msra.mxu0 0.0
    %164 = vmatprep.mubr.f32.mxu0 0.0
    %165 = vmatmul.mubr.f32.gmra.mxu0 %v85
    %v166 = vpop.f32.mrf.mxu0
    %v167 = vadd.f32 0.0, %v166
    %v168 = vpop.f32.mrf.mxu0
    %169 = vmatprep.mubr.f32.mxu0 0.0
    %170 = vmatmul.mubr.f32.gmra.mxu0 %v88
    %v171 = vpop.f32.mrf.mxu0
    %v172 = vadd.f32 0.0, %v171
    %v173 = vpop.f32.mrf.mxu0
    %174 = vmatprep.mubr.f32.mxu0 0.0
    %175 = vmatmul.mubr.f32.gmra.mxu0 %v91
    %v176 = vpop.f32.mrf.mxu0
    %v177 = vadd.f32 0.0, %v176
    %v178 = vpop.f32.mrf.mxu0
    %179 = vmatprep.mubr.f32.mxu0 0.0
    %180 = vmatmul.mubr.f32.gmra.mxu0 %v94
    %v181 = vpop.f32.mrf.mxu0
    %v182 = vadd.f32 0.0, %v181
    %v183 = vpop.f32.mrf.mxu0
    %184 = vdwg.mxu0
    %v185 = vld [vmem:[%s1] sm:$0xff]
    %v186 = vld [vmem:[%s1 + $0x8] sm:$0xff]
    %v187 = vld [vmem:[%s1 + $0x10] sm:$0xff]
    %v188 = vld [vmem:[%s1 + $0x18] sm:$0xff]
    %189 = vset.pattern.permute.xlu0 0
    %190 = vperm.xlu0 %189, %v185
    %v191 = vpop.permute.xlu0 %190
    %192 = vset.pattern.permute.xlu0 0
    %193 = vperm.xlu0 %192, %v186
    %v194 = vpop.permute.xlu0 %193
    %195 = vset.pattern.permute.xlu0 0
    %196 = vperm.xlu0 %195, %v187
    %v197 = vpop.permute.xlu0 %196
    %198 = vset.pattern.permute.xlu0 0
    %199 = vperm.xlu0 %198, %v188
    %v200 = vpop.permute.xlu0 %199
    %vm201 = vcmp.eq.s32.totalorder %v191, %v53
    %vm202 = vcmp.eq.s32.totalorder %v194, %v53
    %vm203 = vcmp.eq.s32.totalorder %v197, %v53
    %vm204 = vcmp.eq.s32.totalorder %v200, %v53
    %v205 = vsel %vm201, 1, 0
    %v206 = vsel %vm202, 1, 0
    %v207 = vsel %vm203, 1, 0
    %v208 = vsel %vm204, 1, 0
    %v209 = vcvt.s32.f32 %v205
    %v210 = vcvt.s32.f32 %v206
    %v211 = vcvt.s32.f32 %v207
    %v212 = vcvt.s32.f32 %v208
    %v213 = vld [vmem:[%s6] sm:$0xff]
    %v214 = vld [vmem:[%s6 + $0x8] sm:$0xff]
    %v215 = vld [vmem:[%s6 + $0x10] sm:$0xff]
    %v216 = vld [vmem:[%s6 + $0x18] sm:$0xff]
    %v217 = vld [vmem:[%s6 + $0x20] sm:$0xff]
    %vm218 = vcmask 326656
    %v220 = vsel %vm218, %v209, 0
    %v223 = vsel %vm218, %v210, 0
    %v226 = vsel %vm218, %v211, 0
    %v229 = vsel %vm218, %v212, 0
    %231 = vmatprep.subr.mxu0 0.0
    %232 = vmatpush1.msra.mxu0 0.0
    %233 = vmatprep.subr.mxu0 0.0
    %234 = vmatpush1.msra.mxu0 0.0
    %235 = vmatprep.subr.mxu0 0.0
    %236 = vmatpush1.msra.mxu0 0.0
    %237 = vmatprep.subr.mxu0 0.0
    %238 = vmatpush1.msra.mxu0 0.0
    %239 = vmatprep.subr.mxu0 0.0
    %240 = vmatpush1.msra.mxu0 0.0
    %241 = vmatprep.subr.mxu0 0.0
    %242 = vmatpush1.msra.mxu0 0.0
    %243 = vmatprep.subr.mxu0 0.0
    %244 = vmatpush1.msra.mxu0 0.0
    %245 = vmatprep.subr.mxu0 0.0
    %246 = vmatpush1.msra.mxu0 0.0
    %247 = vmatprep.subr.mxu0 0.0
    %248 = vmatpush1.msra.mxu0 0.0
    %249 = vmatprep.subr.mxu0 0.0
    %250 = vmatpush1.msra.mxu0 0.0
    %251 = vmatprep.subr.mxu0 0.0
    %252 = vmatpush1.msra.mxu0 0.0
    %253 = vmatprep.subr.mxu0 0.0
    %254 = vmatpush1.msra.mxu0 %v217
    %255 = vmatprep.subr.mxu0 0.0
    %256 = vmatpush1.msra.mxu0 %v216
    %257 = vmatprep.subr.mxu0 0.0
    %258 = vmatpush1.msra.mxu0 %v215
    %259 = vmatprep.subr.mxu0 0.0
    %260 = vmatpush1.msra.mxu0 %v214
    %261 = vmatprep.subr.mxu0 0.0
    %262 = vmatpush1.msra.mxu0 %v213
    %263 = vmatprep.subr.mxu0 0.0
    %264 = vmatpush2.msra.mxu0 0.0
    %265 = vmatprep.subr.mxu0 0.0
    %266 = vmatpush2.msra.mxu0 0.0
    %267 = vmatprep.subr.mxu0 0.0
    %268 = vmatpush2.msra.mxu0 0.0
    %269 = vmatprep.subr.mxu0 0.0
    %270 = vmatpush2.msra.mxu0 0.0
    %271 = vmatprep.subr.mxu0 0.0
    %272 = vmatpush2.msra.mxu0 0.0
    %273 = vmatprep.subr.mxu0 0.0
    %274 = vmatpush2.msra.mxu0 0.0
    %275 = vmatprep.subr.mxu0 0.0
    %276 = vmatpush2.msra.mxu0 0.0
    %277 = vmatprep.subr.mxu0 0.0
    %278 = vmatpush2.msra.mxu0 0.0
    %279 = vmatprep.subr.mxu0 0.0
    %280 = vmatpush2.msra.mxu0 0.0
    %281 = vmatprep.subr.mxu0 0.0
    %282 = vmatpush2.msra.mxu0 0.0
    %283 = vmatprep.subr.mxu0 0.0
    %284 = vmatpush2.msra.mxu0 0.0
    %285 = vmatprep.subr.mxu0 0.0
    %286 = vmatpush2.msra.mxu0 0.0
    %287 = vmatprep.subr.mxu0 0.0
    %288 = vmatpush2.msra.mxu0 0.0
    %289 = vmatprep.subr.mxu0 0.0
    %290 = vmatpush2.msra.mxu0 0.0
    %291 = vmatprep.subr.mxu0 0.0
    %292 = vmatpush2.msra.mxu0 0.0
    %293 = vmatprep.subr.mxu0 0.0
    %294 = vmatpush2.msra.mxu0 0.0
    %295 = vmatprep.mubr.f32.mxu0 0.0
    %296 = vmatmul.mubr.f32.gmra.mxu0 %v220
    %v297 = vpop.f32.mrf.mxu0
    %v298 = vadd.f32 0.0, %v297
    %v299 = vpop.f32.mrf.mxu0
    %300 = vmatprep.mubr.f32.mxu0 0.0
    %301 = vmatmul.mubr.f32.gmra.mxu0 %v223
    %v302 = vpop.f32.mrf.mxu0
    %v303 = vadd.f32 0.0, %v302
    %v304 = vpop.f32.mrf.mxu0
    %305 = vmatprep.mubr.f32.mxu0 0.0
    %306 = vmatmul.mubr.f32.gmra.mxu0 %v226
    %v307 = vpop.f32.mrf.mxu0
    %v308 = vadd.f32 0.0, %v307
    %v309 = vpop.f32.mrf.mxu0
    %310 = vmatprep.mubr.f32.mxu0 0.0
    %311 = vmatmul.mubr.f32.gmra.mxu0 %v229
    %v312 = vpop.f32.mrf.mxu0
    %v313 = vadd.f32 0.0, %v312
    %v314 = vpop.f32.mrf.mxu0
    %315 = vdwg.mxu0
    %v316 = vld [vmem:[%s2] sm:$0xff]
    %v317 = vld [vmem:[%s2 + $0x8] sm:$0xff]
    %v318 = vld [vmem:[%s2 + $0x10] sm:$0xff]
    %v319 = vld [vmem:[%s2 + $0x18] sm:$0xff]
    %320 = vset.pattern.permute.xlu0 0
    %321 = vperm.xlu0 %320, %v316
    %v322 = vpop.permute.xlu0 %321
    %323 = vset.pattern.permute.xlu0 0
    %324 = vperm.xlu0 %323, %v317
    %v325 = vpop.permute.xlu0 %324
    %326 = vset.pattern.permute.xlu0 0
    %327 = vperm.xlu0 %326, %v318
    %v328 = vpop.permute.xlu0 %327
    %329 = vset.pattern.permute.xlu0 0
    %330 = vperm.xlu0 %329, %v319
    %v331 = vpop.permute.xlu0 %330
    %vm332 = vcmp.eq.s32.totalorder %v322, %v53
    %vm333 = vcmp.eq.s32.totalorder %v325, %v53
    %vm334 = vcmp.eq.s32.totalorder %v328, %v53
    %vm335 = vcmp.eq.s32.totalorder %v331, %v53
    %v336 = vsel %vm332, 1, 0
    %v337 = vsel %vm333, 1, 0
    %v338 = vsel %vm334, 1, 0
    %v339 = vsel %vm335, 1, 0
    %v340 = vcvt.s32.f32 %v336
    %v341 = vcvt.s32.f32 %v337
    %v342 = vcvt.s32.f32 %v338
    %v343 = vcvt.s32.f32 %v339
    %v344 = vld [vmem:[%s7] sm:$0xf]
    %vm345 = vcmask 31744
    %v347 = vsel %vm345, %v340, 0
    %v350 = vsel %vm345, %v341, 0
    %v353 = vsel %vm345, %v342, 0
    %v356 = vsel %vm345, %v343, 0
    %vm358 = vcmask 1043456
    %v360 = vsel %vm358, %v344, 0
    %362 = vmatprep.subr.mxu0 0.0
    %363 = vmatpush1.msra.mxu0 0.0
    %364 = vmatprep.subr.mxu0 0.0
    %365 = vmatpush1.msra.mxu0 0.0
    %366 = vmatprep.subr.mxu0 0.0
    %367 = vmatpush1.msra.mxu0 0.0
    %368 = vmatprep.subr.mxu0 0.0
    %369 = vmatpush1.msra.mxu0 0.0
    %370 = vmatprep.subr.mxu0 0.0
    %371 = vmatpush1.msra.mxu0 0.0
    %372 = vmatprep.subr.mxu0 0.0
    %373 = vmatpush1.msra.mxu0 0.0
    %374 = vmatprep.subr.mxu0 0.0
    %375 = vmatpush1.msra.mxu0 0.0
    %376 = vmatprep.subr.mxu0 0.0
    %377 = vmatpush1.msra.mxu0 0.0
    %378 = vmatprep.subr.mxu0 0.0
    %379 = vmatpush1.msra.mxu0 0.0
    %380 = vmatprep.subr.mxu0 0.0
    %381 = vmatpush1.msra.mxu0 0.0
    %382 = vmatprep.subr.mxu0 0.0
    %383 = vmatpush1.msra.mxu0 0.0
    %384 = vmatprep.subr.mxu0 0.0
    %385 = vmatpush1.msra.mxu0 0.0
    %386 = vmatprep.subr.mxu0 0.0
    %387 = vmatpush1.msra.mxu0 0.0
    %388 = vmatprep.subr.mxu0 0.0
    %389 = vmatpush1.msra.mxu0 0.0
    %390 = vmatprep.subr.mxu0 0.0
    %391 = vmatpush1.msra.mxu0 0.0
    %392 = vmatprep.subr.mxu0 0.0
    %393 = vmatpush1.msra.mxu0 %v360
    %394 = vmatprep.subr.mxu0 0.0
    %395 = vmatpush2.msra.mxu0 0.0
    %396 = vmatprep.subr.mxu0 0.0
    %397 = vmatpush2.msra.mxu0 0.0
    %398 = vmatprep.subr.mxu0 0.0
    %399 = vmatpush2.msra.mxu0 0.0
    %400 = vmatprep.subr.mxu0 0.0
    %401 = vmatpush2.msra.mxu0 0.0
    %402 = vmatprep.subr.mxu0 0.0
    %403 = vmatpush2.msra.mxu0 0.0
    %404 = vmatprep.subr.mxu0 0.0
    %405 = vmatpush2.msra.mxu0 0.0
    %406 = vmatprep.subr.mxu0 0.0
    %407 = vmatpush2.msra.mxu0 0.0
    %408 = vmatprep.subr.mxu0 0.0
    %409 = vmatpush2.msra.mxu0 0.0
    %410 = vmatprep.subr.mxu0 0.0
    %411 = vmatpush2.msra.mxu0 0.0
    %412 = vmatprep.subr.mxu0 0.0
    %413 = vmatpush2.msra.mxu0 0.0
    %414 = vmatprep.subr.mxu0 0.0
    %415 = vmatpush2.msra.mxu0 0.0
    %416 = vmatprep.subr.mxu0 0.0
    %417 = vmatpush2.msra.mxu0 0.0
    %418 = vmatprep.subr.mxu0 0.0
    %419 = vmatpush2.msra.mxu0 0.0
    %420 = vmatprep.subr.mxu0 0.0
    %421 = vmatpush2.msra.mxu0 0.0
    %422 = vmatprep.subr.mxu0 0.0
    %423 = vmatpush2.msra.mxu0 0.0
    %424 = vmatprep.subr.mxu0 0.0
    %425 = vmatpush2.msra.mxu0 0.0
    %426 = vmatprep.mubr.f32.mxu0 0.0
    %427 = vmatmul.mubr.f32.gmra.mxu0 %v347
    %v428 = vpop.f32.mrf.mxu0
    %v429 = vadd.f32 0.0, %v428
    %v430 = vpop.f32.mrf.mxu0
    %431 = vmatprep.mubr.f32.mxu0 0.0
    %432 = vmatmul.mubr.f32.gmra.mxu0 %v350
    %v433 = vpop.f32.mrf.mxu0
    %v434 = vadd.f32 0.0, %v433
    %v435 = vpop.f32.mrf.mxu0
    %436 = vmatprep.mubr.f32.mxu0 0.0
    %437 = vmatmul.mubr.f32.gmra.mxu0 %v353
    %v438 = vpop.f32.mrf.mxu0
    %v439 = vadd.f32 0.0, %v438
    %v440 = vpop.f32.mrf.mxu0
    %441 = vmatprep.mubr.f32.mxu0 0.0
    %442 = vmatmul.mubr.f32.gmra.mxu0 %v356
    %v443 = vpop.f32.mrf.mxu0
    %v444 = vadd.f32 0.0, %v443
    %v445 = vpop.f32.mrf.mxu0
    %446 = vdwg.mxu0
    %v447 = vld [vmem:[%s8] sm:$0xff]
    %v448 = vld [vmem:[%s8 + $0x8] sm:$0xff]
    %s449 = scalar_lea.vmem %s8, 16
    %v450 = vld [vmem:[%s449] sm:$0xff]
    %v451 = vld [vmem:[%s449 + $0x8] sm:$0xff]
    %vm452 = vcmask 130048
    %v454 = vsel %vm452, %v298, 0
    %v457 = vsel %vm452, %v303, 0
    %v460 = vsel %vm452, %v308, 0
    %v463 = vsel %vm452, %v313, 0
    %465 = vmatprep.subr.mxu0 0.0
    %466 = vmatpush1.msra.mxu0 0.0
    %467 = vmatprep.subr.mxu0 0.0
    %468 = vmatpush1.msra.mxu0 0.0
    %469 = vmatprep.subr.mxu0 0.0
    %470 = vmatpush1.msra.mxu0 0.0
    %471 = vmatprep.subr.mxu0 0.0
    %472 = vmatpush1.msra.mxu0 0.0
    %473 = vmatprep.subr.mxu0 0.0
    %474 = vmatpush1.msra.mxu0 0.0
    %475 = vmatprep.subr.mxu0 0.0
    %476 = vmatpush1.msra.mxu0 0.0
    %477 = vmatprep.subr.mxu0 0.0
    %478 = vmatpush1.msra.mxu0 0.0
    %479 = vmatprep.subr.mxu0 0.0
    %480 = vmatpush1.msra.mxu0 0.0
    %481 = vmatprep.subr.mxu0 0.0
    %482 = vmatpush1.msra.mxu0 0.0
    %483 = vmatprep.subr.mxu0 0.0
    %484 = vmatpush1.msra.mxu0 0.0
    %485 = vmatprep.subr.mxu0 0.0
    %486 = vmatpush1.msra.mxu0 0.0
    %487 = vmatprep.subr.mxu0 0.0
    %488 = vmatpush1.msra.mxu0 0.0
    %489 = vmatprep.subr.mxu0 0.0
    %490 = vmatpush1.msra.mxu0 0.0
    %491 = vmatprep.subr.mxu0 0.0
    %492 = vmatpush1.msra.mxu0 0.0
    %493 = vmatprep.subr.mxu0 0.0
    %494 = vmatpush1.msra.mxu0 %v451
    %495 = vmatprep.subr.mxu0 0.0
    %496 = vmatpush1.msra.mxu0 %v450
    %497 = vmatprep.subr.mxu0 0.0
    %498 = vmatpush2.msra.mxu0 0.0
    %499 = vmatprep.subr.mxu0 0.0
    %500 = vmatpush2.msra.mxu0 0.0
    %501 = vmatprep.subr.mxu0 0.0
    %502 = vmatpush2.msra.mxu0 0.0
    %503 = vmatprep.subr.mxu0 0.0
    %504 = vmatpush2.msra.mxu0 0.0
    %505 = vmatprep.subr.mxu0 0.0
    %506 = vmatpush2.msra.mxu0 0.0
    %507 = vmatprep.subr.mxu0 0.0
    %508 = vmatpush2.msra.mxu0 0.0
    %509 = vmatprep.subr.mxu0 0.0
    %510 = vmatpush2.msra.mxu0 0.0
    %511 = vmatprep.subr.mxu0 0.0
    %512 = vmatpush2.msra.mxu0 0.0
    %513 = vmatprep.subr.mxu0 0.0
    %514 = vmatpush2.msra.mxu0 0.0
    %515 = vmatprep.subr.mxu0 0.0
    %516 = vmatpush2.msra.mxu0 0.0
    %517 = vmatprep.subr.mxu0 0.0
    %518 = vmatpush2.msra.mxu0 0.0
    %519 = vmatprep.subr.mxu0 0.0
    %520 = vmatpush2.msra.mxu0 0.0
    %521 = vmatprep.subr.mxu0 0.0
    %522 = vmatpush2.msra.mxu0 0.0
    %523 = vmatprep.subr.mxu0 0.0
    %524 = vmatpush2.msra.mxu0 0.0
    %525 = vmatprep.subr.mxu0 0.0
    %526 = vmatpush2.msra.mxu0 0.0
    %527 = vmatprep.subr.mxu0 0.0
    %528 = vmatpush2.msra.mxu0 0.0
    %529 = vmatprep.mubr.f32.mxu0 0.0
    %530 = vmatmul.mubr.f32.gmra.mxu0 %v454
    %v531 = vpop.f32.mrf.mxu0
    %v532 = vadd.f32 0.0, %v531
    %v533 = vpop.f32.mrf.mxu0
    %534 = vmatprep.mubr.f32.mxu0 0.0
    %535 = vmatmul.mubr.f32.gmra.mxu0 %v457
    %v536 = vpop.f32.mrf.mxu0
    %v537 = vadd.f32 0.0, %v536
    %v538 = vpop.f32.mrf.mxu0
    %539 = vmatprep.mubr.f32.mxu0 0.0
    %540 = vmatmul.mubr.f32.gmra.mxu0 %v460
    %v541 = vpop.f32.mrf.mxu0
    %v542 = vadd.f32 0.0, %v541
    %v543 = vpop.f32.mrf.mxu0
    %544 = vmatprep.mubr.f32.mxu0 0.0
    %545 = vmatmul.mubr.f32.gmra.mxu0 %v463
    %v546 = vpop.f32.mrf.mxu0
    %v547 = vadd.f32 0.0, %v546
    %v548 = vpop.f32.mrf.mxu0
    %549 = vdwg.mxu0
    %v551 = vsel %vm452, %v167, 0
    %v554 = vsel %vm452, %v172, 0
    %v557 = vsel %vm452, %v177, 0
    %v560 = vsel %vm452, %v182, 0
    %562 = vmatprep.subr.mxu0 0.0
    %563 = vmatpush1.msra.mxu0 0.0
    %564 = vmatprep.subr.mxu0 0.0
    %565 = vmatpush1.msra.mxu0 0.0
    %566 = vmatprep.subr.mxu0 0.0
    %567 = vmatpush1.msra.mxu0 0.0
    %568 = vmatprep.subr.mxu0 0.0
    %569 = vmatpush1.msra.mxu0 0.0
    %570 = vmatprep.subr.mxu0 0.0
    %571 = vmatpush1.msra.mxu0 0.0
    %572 = vmatprep.subr.mxu0 0.0
    %573 = vmatpush1.msra.mxu0 0.0
    %574 = vmatprep.subr.mxu0 0.0
    %575 = vmatpush1.msra.mxu0 0.0
    %576 = vmatprep.subr.mxu0 0.0
    %577 = vmatpush1.msra.mxu0 0.0
    %578 = vmatprep.subr.mxu0 0.0
    %579 = vmatpush1.msra.mxu0 0.0
    %580 = vmatprep.subr.mxu0 0.0
    %581 = vmatpush1.msra.mxu0 0.0
    %582 = vmatprep.subr.mxu0 0.0
    %583 = vmatpush1.msra.mxu0 0.0
    %584 = vmatprep.subr.mxu0 0.0
    %585 = vmatpush1.msra.mxu0 0.0
    %586 = vmatprep.subr.mxu0 0.0
    %587 = vmatpush1.msra.mxu0 0.0
    %588 = vmatprep.subr.mxu0 0.0
    %589 = vmatpush1.msra.mxu0 0.0
    %590 = vmatprep.subr.mxu0 0.0
    %591 = vmatpush1.msra.mxu0 %v448
    %592 = vmatprep.subr.mxu0 0.0
    %593 = vmatpush1.msra.mxu0 %v447
    %594 = vmatprep.subr.mxu0 0.0
    %595 = vmatpush2.msra.mxu0 0.0
    %596 = vmatprep.subr.mxu0 0.0
    %597 = vmatpush2.msra.mxu0 0.0
    %598 = vmatprep.subr.mxu0 0.0
    %599 = vmatpush2.msra.mxu0 0.0
    %600 = vmatprep.subr.mxu0 0.0
    %601 = vmatpush2.msra.mxu0 0.0
    %602 = vmatprep.subr.mxu0 0.0
    %603 = vmatpush2.msra.mxu0 0.0
    %604 = vmatprep.subr.mxu0 0.0
    %605 = vmatpush2.msra.mxu0 0.0
    %606 = vmatprep.subr.mxu0 0.0
    %607 = vmatpush2.msra.mxu0 0.0
    %608 = vmatprep.subr.mxu0 0.0
    %609 = vmatpush2.msra.mxu0 0.0
    %610 = vmatprep.subr.mxu0 0.0
    %611 = vmatpush2.msra.mxu0 0.0
    %612 = vmatprep.subr.mxu0 0.0
    %613 = vmatpush2.msra.mxu0 0.0
    %614 = vmatprep.subr.mxu0 0.0
    %615 = vmatpush2.msra.mxu0 0.0
    %616 = vmatprep.subr.mxu0 0.0
    %617 = vmatpush2.msra.mxu0 0.0
    %618 = vmatprep.subr.mxu0 0.0
    %619 = vmatpush2.msra.mxu0 0.0
    %620 = vmatprep.subr.mxu0 0.0
    %621 = vmatpush2.msra.mxu0 0.0
    %622 = vmatprep.subr.mxu0 0.0
    %623 = vmatpush2.msra.mxu0 0.0
    %624 = vmatprep.subr.mxu0 0.0
    %625 = vmatpush2.msra.mxu0 0.0
    %626 = vmatprep.mubr.f32.mxu0 0.0
    %627 = vmatmul.mubr.f32.gmra.mxu0 %v551
    %v628 = vpop.f32.mrf.mxu0
    %v629 = vadd.f32 %v532, %v628
    %v630 = vpop.f32.mrf.mxu0
    %631 = vmatprep.mubr.f32.mxu0 0.0
    %632 = vmatmul.mubr.f32.gmra.mxu0 %v554
    %v633 = vpop.f32.mrf.mxu0
    %v634 = vadd.f32 %v537, %v633
    %v635 = vpop.f32.mrf.mxu0
    %636 = vmatprep.mubr.f32.mxu0 0.0
    %637 = vmatmul.mubr.f32.gmra.mxu0 %v557
    %v638 = vpop.f32.mrf.mxu0
    %v639 = vadd.f32 %v542, %v638
    %v640 = vpop.f32.mrf.mxu0
    %641 = vmatprep.mubr.f32.mxu0 0.0
    %642 = vmatmul.mubr.f32.gmra.mxu0 %v560
    %v643 = vpop.f32.mrf.mxu0
    %v644 = vadd.f32 %v547, %v643
    %v645 = vpop.f32.mrf.mxu0
    %646 = vdwg.mxu0
    %s647 = scalar_lea.vmem %s8, 32
    %v648 = vld [vmem:[%s647] sm:$0xff]
    %v649 = vld [vmem:[%s647 + $0x8] sm:$0xff]
    %v651 = vsel %vm452, %v429, 0
    %v654 = vsel %vm452, %v434, 0
    %v657 = vsel %vm452, %v439, 0
    %v660 = vsel %vm452, %v444, 0
    %662 = vmatprep.subr.mxu0 0.0
    %663 = vmatpush1.msra.mxu0 0.0
    %664 = vmatprep.subr.mxu0 0.0
    %665 = vmatpush1.msra.mxu0 0.0
    %666 = vmatprep.subr.mxu0 0.0
    %667 = vmatpush1.msra.mxu0 0.0
    %668 = vmatprep.subr.mxu0 0.0
    %669 = vmatpush1.msra.mxu0 0.0
    %670 = vmatprep.subr.mxu0 0.0
    %671 = vmatpush1.msra.mxu0 0.0
    %672 = vmatprep.subr.mxu0 0.0
    %673 = vmatpush1.msra.mxu0 0.0
    %674 = vmatprep.subr.mxu0 0.0
    %675 = vmatpush1.msra.mxu0 0.0
    %676 = vmatprep.subr.mxu0 0.0
    %677 = vmatpush1.msra.mxu0 0.0
    %678 = vmatprep.subr.mxu0 0.0
    %679 = vmatpush1.msra.mxu0 0.0
    %680 = vmatprep.subr.mxu0 0.0
    %681 = vmatpush1.msra.mxu0 0.0
    %682 = vmatprep.subr.mxu0 0.0
    %683 = vmatpush1.msra.mxu0 0.0
    %684 = vmatprep.subr.mxu0 0.0
    %685 = vmatpush1.msra.mxu0 0.0
    %686 = vmatprep.subr.mxu0 0.0
    %687 = vmatpush1.msra.mxu0 0.0
    %688 = vmatprep.subr.mxu0 0.0
    %689 = vmatpush1.msra.mxu0 0.0
    %690 = vmatprep.subr.mxu0 0.0
    %691 = vmatpush1.msra.mxu0 %v649
    %692 = vmatprep.subr.mxu0 0.0
    %693 = vmatpush1.msra.mxu0 %v648
    %694 = vmatprep.subr.mxu0 0.0
    %695 = vmatpush2.msra.mxu0 0.0
    %696 = vmatprep.subr.mxu0 0.0
    %697 = vmatpush2.msra.mxu0 0.0
    %698 = vmatprep.subr.mxu0 0.0
    %699 = vmatpush2.msra.mxu0 0.0
    %700 = vmatprep.subr.mxu0 0.0
    %701 = vmatpush2.msra.mxu0 0.0
    %702 = vmatprep.subr.mxu0 0.0
    %703 = vmatpush2.msra.mxu0 0.0
    %704 = vmatprep.subr.mxu0 0.0
    %705 = vmatpush2.msra.mxu0 0.0
    %706 = vmatprep.subr.mxu0 0.0
    %707 = vmatpush2.msra.mxu0 0.0
    %708 = vmatprep.subr.mxu0 0.0
    %709 = vmatpush2.msra.mxu0 0.0
    %710 = vmatprep.subr.mxu0 0.0
    %711 = vmatpush2.msra.mxu0 0.0
    %712 = vmatprep.subr.mxu0 0.0
    %713 = vmatpush2.msra.mxu0 0.0
    %714 = vmatprep.subr.mxu0 0.0
    %715 = vmatpush2.msra.mxu0 0.0
    %716 = vmatprep.subr.mxu0 0.0
    %717 = vmatpush2.msra.mxu0 0.0
    %718 = vmatprep.subr.mxu0 0.0
    %719 = vmatpush2.msra.mxu0 0.0
    %720 = vmatprep.subr.mxu0 0.0
    %721 = vmatpush2.msra.mxu0 0.0
    %722 = vmatprep.subr.mxu0 0.0
    %723 = vmatpush2.msra.mxu0 0.0
    %724 = vmatprep.subr.mxu0 0.0
    %725 = vmatpush2.msra.mxu0 0.0
    %726 = vmatprep.mubr.f32.mxu0 0.0
    %727 = vmatmul.mubr.f32.gmra.mxu0 %v651
    %v728 = vpop.f32.mrf.mxu0
    %v729 = vadd.f32 0.0, %v728
    %v730 = vpop.f32.mrf.mxu0
    %731 = vmatprep.mubr.f32.mxu0 0.0
    %732 = vmatmul.mubr.f32.gmra.mxu0 %v654
    %v733 = vpop.f32.mrf.mxu0
    %v734 = vadd.f32 0.0, %v733
    %v735 = vpop.f32.mrf.mxu0
    %736 = vmatprep.mubr.f32.mxu0 0.0
    %737 = vmatmul.mubr.f32.gmra.mxu0 %v657
    %v738 = vpop.f32.mrf.mxu0
    %v739 = vadd.f32 0.0, %v738
    %v740 = vpop.f32.mrf.mxu0
    %741 = vmatprep.mubr.f32.mxu0 0.0
    %742 = vmatmul.mubr.f32.gmra.mxu0 %v660
    %v743 = vpop.f32.mrf.mxu0
    %v744 = vadd.f32 0.0, %v743
    %v745 = vpop.f32.mrf.mxu0
    %746 = vdwg.mxu0
    %v747 = vadd.f32 %v629, %v729
    %v748 = vadd.f32 %v634, %v734
    %v749 = vadd.f32 %v639, %v739
    %v750 = vadd.f32 %v644, %v744
    %v751 = vld [vmem:[%s9] sm:$0x1]
    %v753 = vlaneseq
    %v754 = vshrl.u32 %v753, 7
    %v755 = vsub.s32 0, %v754
    %v756 = vrot.slane %v751, %v755
    %v758 = vadd.f32 %v747, %v756
    %v759 = vadd.f32 %v748, %v756
    %v760 = vadd.f32 %v749, %v756
    %v761 = vadd.f32 %v750, %v756
    %v762 = vmax.f32 %v758, 0.0
    %v763 = vmax.f32 %v759, 0.0
    %v764 = vmax.f32 %v760, 0.0
    %v765 = vmax.f32 %v761, 0.0
    %v766 = vld [vmem:[%s3] sm:$0xff]
    %v767 = vld [vmem:[%s3 + $0x8] sm:$0xff]
    %v768 = vld [vmem:[%s3 + $0x10] sm:$0xff]
    %v769 = vld [vmem:[%s3 + $0x18] sm:$0xff]
    %v770 = vld [vmem:[%s4] sm:$0xff]
    %v771 = vld [vmem:[%s4 + $0x8] sm:$0xff]
    %v772 = vld [vmem:[%s4 + $0x10] sm:$0xff]
    %v773 = vld [vmem:[%s4 + $0x18] sm:$0xff]
    %v778 = vrot.slane %v762, 7
    %v779 = vrot.slane %v763, 7
    %v780 = vsel %vm96, %v778, %v779
    %v781 = vrot.slane %v764, 7
    %v782 = vsel %vm96, %v779, %v781
    %v783 = vrot.slane %v765, 7
    %v784 = vsel %vm96, %v781, %v783
    %v789 = vsel %vm96, 0.0, %v778
    %791 = vset.pattern.permute.xlu0 0
    %792 = vperm.xlu0 %791, %v766
    %v793 = vpop.permute.xlu0 %792
    %796 = vset.pattern.permute.xlu0 0
    %797 = vperm.xlu0 %796, %v767
    %v798 = vpop.permute.xlu0 %797
    %801 = vset.pattern.permute.xlu0 0
    %802 = vperm.xlu0 %801, %v768
    %v803 = vpop.permute.xlu0 %802
    %806 = vset.pattern.permute.xlu0 0
    %807 = vperm.xlu0 %806, %v769
    %v808 = vpop.permute.xlu0 %807
    %v810 = vmul.f32 %v789, %v793
    %v811 = vmul.f32 %v780, %v798
    %v812 = vmul.f32 %v782, %v803
    %v813 = vmul.f32 %v784, %v808
    %vm814 = vcmask 1046528
    %v815 = vrot.slane %v762, 1
    %v816 = vrot.slane %v763, 1
    %v817 = vsel %vm814, %v815, %v816
    %v818 = vrot.slane %v764, 1
    %v819 = vsel %vm814, %v816, %v818
    %v820 = vrot.slane %v765, 1
    %v821 = vsel %vm814, %v818, %v820
    %v826 = vsel %vm814, %v820, 0.0
    %828 = vset.pattern.permute.xlu0 0
    %829 = vperm.xlu0 %828, %v770
    %v830 = vpop.permute.xlu0 %829
    %833 = vset.pattern.permute.xlu0 0
    %834 = vperm.xlu0 %833, %v771
    %v835 = vpop.permute.xlu0 %834
    %838 = vset.pattern.permute.xlu0 0
    %839 = vperm.xlu0 %838, %v772
    %v840 = vpop.permute.xlu0 %839
    %843 = vset.pattern.permute.xlu0 0
    %844 = vperm.xlu0 %843, %v773
    %v845 = vpop.permute.xlu0 %844
    %v847 = vmul.f32 %v817, %v830
    %v848 = vmul.f32 %v819, %v835
    %v849 = vmul.f32 %v821, %v840
    %v850 = vmul.f32 %v826, %v845
    %851 = vrot.lane.b32.xlu0 %v762, 32
    %v852 = vpop.permute.xlu0 %851
    %853 = vrot.lane.b32.xlu0 %v763, 32
    %v854 = vpop.permute.xlu0 %853
    %855 = vrot.lane.b32.xlu0 %v764, 32
    %v856 = vpop.permute.xlu0 %855
    %857 = vrot.lane.b32.xlu0 %v765, 32
    %v858 = vpop.permute.xlu0 %857
    %867 = vrot.lane.b32.xlu0 %v847, 64
    %v868 = vpop.permute.xlu0 %867
    %869 = vrot.lane.b32.xlu0 %v848, 64
    %v870 = vpop.permute.xlu0 %869
    %871 = vrot.lane.b32.xlu0 %v849, 64
    %v872 = vpop.permute.xlu0 %871
    %873 = vrot.lane.b32.xlu0 %v850, 64
    %v874 = vpop.permute.xlu0 %873
    %vm879 = vcmask 261120
    %v880 = vsel %vm879, %v810, %v852
    %v881 = vsel %vm879, %v811, %v854
    %v882 = vsel %vm879, %v812, %v856
    %v883 = vsel %vm879, %v813, %v858
    %vm884 = vcmask 523264
    %v885 = vsel %vm884, %v880, %v868
    %v886 = vsel %vm884, %v881, %v870
    %v887 = vsel %vm884, %v882, %v872
    %v888 = vsel %vm884, %v883, %v874
    %v889 = vld [vmem:[%s10] sm:$0xff]
    %v890 = vld [vmem:[%s10 + $0x8] sm:$0xff]
    %v891 = vld [vmem:[%s10 + $0x10] sm:$0xff]
    %v892 = vld [vmem:[%s10 + $0x18] sm:$0xff]
    %v893 = vld [vmem:[%s10 + $0x20] sm:$0xff]
    %v894 = vld [vmem:[%s10 + $0x28] sm:$0xff]
    %v895 = vld [vmem:[%s10 + $0x30] sm:$0xff]
    %v896 = vld [vmem:[%s10 + $0x38] sm:$0xff]
    %v897 = vld [vmem:[%s10 + $0x40] sm:$0xff]
    %v898 = vld [vmem:[%s10 + $0x48] sm:$0xff]
    %v899 = vld [vmem:[%s10 + $0x50] sm:$0xff]
    %v900 = vld [vmem:[%s10 + $0x58] sm:$0xff]
    %v901 = vld [vmem:[%s11] sm:$0x1]
    %v903 = vlaneseq
    %v904 = vshrl.u32 %v903, 7
    %v905 = vsub.s32 0, %v904
    %v906 = vrot.slane %v901, %v905
    %vm908 = vcmask 785408
    %v910 = vsel %vm908, %v885, 0
    %v913 = vsel %vm908, %v886, 0
    %v916 = vsel %vm908, %v887, 0
    %v919 = vsel %vm908, %v888, 0
    %921 = vmatprep.subr.mxu0 0.0
    %922 = vmatpush1.msra.mxu0 0.0
    %923 = vmatprep.subr.mxu0 0.0
    %924 = vmatpush1.msra.mxu0 0.0
    %925 = vmatprep.subr.mxu0 0.0
    %926 = vmatpush1.msra.mxu0 0.0
    %927 = vmatprep.subr.mxu0 0.0
    %928 = vmatpush1.msra.mxu0 0.0
    %929 = vmatprep.subr.mxu0 0.0
    %930 = vmatpush1.msra.mxu0 %v900
    %931 = vmatprep.subr.mxu0 0.0
    %932 = vmatpush1.msra.mxu0 %v899
    %933 = vmatprep.subr.mxu0 0.0
    %934 = vmatpush1.msra.mxu0 %v898
    %935 = vmatprep.subr.mxu0 0.0
    %936 = vmatpush1.msra.mxu0 %v897
    %937 = vmatprep.subr.mxu0 0.0
    %938 = vmatpush1.msra.mxu0 %v896
    %939 = vmatprep.subr.mxu0 0.0
    %940 = vmatpush1.msra.mxu0 %v895
    %941 = vmatprep.subr.mxu0 0.0
    %942 = vmatpush1.msra.mxu0 %v894
    %943 = vmatprep.subr.mxu0 0.0
    %944 = vmatpush1.msra.mxu0 %v893
    %945 = vmatprep.subr.mxu0 0.0
    %946 = vmatpush1.msra.mxu0 %v892
    %947 = vmatprep.subr.mxu0 0.0
    %948 = vmatpush1.msra.mxu0 %v891
    %949 = vmatprep.subr.mxu0 0.0
    %950 = vmatpush1.msra.mxu0 %v890
    %951 = vmatprep.subr.mxu0 0.0
    %952 = vmatpush1.msra.mxu0 %v889
    %953 = vmatprep.subr.mxu0 0.0
    %954 = vmatpush2.msra.mxu0 0.0
    %955 = vmatprep.subr.mxu0 0.0
    %956 = vmatpush2.msra.mxu0 0.0
    %957 = vmatprep.subr.mxu0 0.0
    %958 = vmatpush2.msra.mxu0 0.0
    %959 = vmatprep.subr.mxu0 0.0
    %960 = vmatpush2.msra.mxu0 0.0
    %961 = vmatprep.subr.mxu0 0.0
    %962 = vmatpush2.msra.mxu0 0.0
    %963 = vmatprep.subr.mxu0 0.0
    %964 = vmatpush2.msra.mxu0 0.0
    %965 = vmatprep.subr.mxu0 0.0
    %966 = vmatpush2.msra.mxu0 0.0
    %967 = vmatprep.subr.mxu0 0.0
    %968 = vmatpush2.msra.mxu0 0.0
    %969 = vmatprep.subr.mxu0 0.0
    %970 = vmatpush2.msra.mxu0 0.0
    %971 = vmatprep.subr.mxu0 0.0
    %972 = vmatpush2.msra.mxu0 0.0
    %973 = vmatprep.subr.mxu0 0.0
    %974 = vmatpush2.msra.mxu0 0.0
    %975 = vmatprep.subr.mxu0 0.0
    %976 = vmatpush2.msra.mxu0 0.0
    %977 = vmatprep.subr.mxu0 0.0
    %978 = vmatpush2.msra.mxu0 0.0
    %979 = vmatprep.subr.mxu0 0.0
    %980 = vmatpush2.msra.mxu0 0.0
    %981 = vmatprep.subr.mxu0 0.0
    %982 = vmatpush2.msra.mxu0 0.0
    %983 = vmatprep.subr.mxu0 0.0
    %984 = vmatpush2.msra.mxu0 0.0
    %985 = vmatprep.mubr.f32.mxu0 0.0
    %986 = vmatmul.mubr.f32.gmra.mxu0 %v910
    %v987 = vpop.f32.mrf.mxu0
    %v988 = vadd.f32 %v906, %v987
    %v989 = vpop.f32.mrf.mxu0
    %990 = vmatprep.mubr.f32.mxu0 0.0
    %991 = vmatmul.mubr.f32.gmra.mxu0 %v913
    %v992 = vpop.f32.mrf.mxu0
    %v993 = vadd.f32 %v906, %v992
    %v994 = vpop.f32.mrf.mxu0
    %995 = vmatprep.mubr.f32.mxu0 0.0
    %996 = vmatmul.mubr.f32.gmra.mxu0 %v916
    %v997 = vpop.f32.mrf.mxu0
    %v998 = vadd.f32 %v906, %v997
    %v999 = vpop.f32.mrf.mxu0
    %1000 = vmatprep.mubr.f32.mxu0 0.0
    %1001 = vmatmul.mubr.f32.gmra.mxu0 %v919
    %v1002 = vpop.f32.mrf.mxu0
    %v1003 = vadd.f32 %v906, %v1002
    %v1004 = vpop.f32.mrf.mxu0
    %1005 = vdwg.mxu0
    %v1006 = vmax.f32 %v988, 0.0
    %v1007 = vmax.f32 %v993, 0.0
    %v1008 = vmax.f32 %v998, 0.0
    %v1009 = vmax.f32 %v1003, 0.0
    %v1014 = vrot.slane %v1006, 7
    %v1015 = vrot.slane %v1007, 7
    %v1016 = vsel %vm96, %v1014, %v1015
    %v1017 = vrot.slane %v1008, 7
    %v1018 = vsel %vm96, %v1015, %v1017
    %v1019 = vrot.slane %v1009, 7
    %v1020 = vsel %vm96, %v1017, %v1019
    %v1025 = vsel %vm96, 0.0, %v1014
    %v1026 = vmul.f32 %v1025, %v793
    %v1027 = vmul.f32 %v1016, %v798
    %v1028 = vmul.f32 %v1018, %v803
    %v1029 = vmul.f32 %v1020, %v808
    %v1030 = vrot.slane %v1006, 1
    %v1031 = vrot.slane %v1007, 1
    %v1032 = vsel %vm814, %v1030, %v1031
    %v1033 = vrot.slane %v1008, 1
    %v1034 = vsel %vm814, %v1031, %v1033
    %v1035 = vrot.slane %v1009, 1
    %v1036 = vsel %vm814, %v1033, %v1035
    %v1041 = vsel %vm814, %v1035, 0.0
    %v1042 = vmul.f32 %v1032, %v830
    %v1043 = vmul.f32 %v1034, %v835
    %v1044 = vmul.f32 %v1036, %v840
    %v1045 = vmul.f32 %v1041, %v845
    %1046 = vrot.lane.b32.xlu0 %v1006, 32
    %v1047 = vpop.permute.xlu0 %1046
    %1048 = vrot.lane.b32.xlu0 %v1007, 32
    %v1049 = vpop.permute.xlu0 %1048
    %1050 = vrot.lane.b32.xlu0 %v1008, 32
    %v1051 = vpop.permute.xlu0 %1050
    %1052 = vrot.lane.b32.xlu0 %v1009, 32
    %v1053 = vpop.permute.xlu0 %1052
    %1062 = vrot.lane.b32.xlu0 %v1042, 64
    %v1063 = vpop.permute.xlu0 %1062
    %1064 = vrot.lane.b32.xlu0 %v1043, 64
    %v1065 = vpop.permute.xlu0 %1064
    %1066 = vrot.lane.b32.xlu0 %v1044, 64
    %v1067 = vpop.permute.xlu0 %1066
    %1068 = vrot.lane.b32.xlu0 %v1045, 64
    %v1069 = vpop.permute.xlu0 %1068
    %v1074 = vsel %vm879, %v1026, %v1047
    %v1075 = vsel %vm879, %v1027, %v1049
    %v1076 = vsel %vm879, %v1028, %v1051
    %v1077 = vsel %vm879, %v1029, %v1053
    %v1078 = vsel %vm884, %v1074, %v1063
    %v1079 = vsel %vm884, %v1075, %v1065
    %v1080 = vsel %vm884, %v1076, %v1067
    %v1081 = vsel %vm884, %v1077, %v1069
    %s1082 = scalar_lea.vmem %s10, 96
    %v1083 = vld [vmem:[%s1082] sm:$0xff]
    %v1084 = vld [vmem:[%s1082 + $0x8] sm:$0xff]
    %v1085 = vld [vmem:[%s1082 + $0x10] sm:$0xff]
    %v1086 = vld [vmem:[%s1082 + $0x18] sm:$0xff]
    %v1087 = vld [vmem:[%s1082 + $0x20] sm:$0xff]
    %v1088 = vld [vmem:[%s1082 + $0x28] sm:$0xff]
    %v1089 = vld [vmem:[%s1082 + $0x30] sm:$0xff]
    %v1090 = vld [vmem:[%s1082 + $0x38] sm:$0xff]
    %v1091 = vld [vmem:[%s1082 + $0x40] sm:$0xff]
    %v1092 = vld [vmem:[%s1082 + $0x48] sm:$0xff]
    %v1093 = vld [vmem:[%s1082 + $0x50] sm:$0xff]
    %v1094 = vld [vmem:[%s1082 + $0x58] sm:$0xff]
    %s1095 = scalar_lea.vmem %s11, 1
    %v1096 = vld [vmem:[%s1095] sm:$0x1]
    %v1098 = vlaneseq
    %v1099 = vshrl.u32 %v1098, 7
    %v1100 = vsub.s32 0, %v1099
    %v1101 = vrot.slane %v1096, %v1100
    %v1104 = vsel %vm908, %v1078, 0
    %v1107 = vsel %vm908, %v1079, 0
    %v1110 = vsel %vm908, %v1080, 0
    %v1113 = vsel %vm908, %v1081, 0
    %1115 = vmatprep.subr.mxu0 0.0
    %1116 = vmatpush1.msra.mxu0 0.0
    %1117 = vmatprep.subr.mxu0 0.0
    %1118 = vmatpush1.msra.mxu0 0.0
    %1119 = vmatprep.subr.mxu0 0.0
    %1120 = vmatpush1.msra.mxu0 0.0
    %1121 = vmatprep.subr.mxu0 0.0
    %1122 = vmatpush1.msra.mxu0 0.0
    %1123 = vmatprep.subr.mxu0 0.0
    %1124 = vmatpush1.msra.mxu0 %v1094
    %1125 = vmatprep.subr.mxu0 0.0
    %1126 = vmatpush1.msra.mxu0 %v1093
    %1127 = vmatprep.subr.mxu0 0.0
    %1128 = vmatpush1.msra.mxu0 %v1092
    %1129 = vmatprep.subr.mxu0 0.0
    %1130 = vmatpush1.msra.mxu0 %v1091
    %1131 = vmatprep.subr.mxu0 0.0
    %1132 = vmatpush1.msra.mxu0 %v1090
    %1133 = vmatprep.subr.mxu0 0.0
    %1134 = vmatpush1.msra.mxu0 %v1089
    %1135 = vmatprep.subr.mxu0 0.0
    %1136 = vmatpush1.msra.mxu0 %v1088
    %1137 = vmatprep.subr.mxu0 0.0
    %1138 = vmatpush1.msra.mxu0 %v1087
    %1139 = vmatprep.subr.mxu0 0.0
    %1140 = vmatpush1.msra.mxu0 %v1086
    %1141 = vmatprep.subr.mxu0 0.0
    %1142 = vmatpush1.msra.mxu0 %v1085
    %1143 = vmatprep.subr.mxu0 0.0
    %1144 = vmatpush1.msra.mxu0 %v1084
    %1145 = vmatprep.subr.mxu0 0.0
    %1146 = vmatpush1.msra.mxu0 %v1083
    %1147 = vmatprep.subr.mxu0 0.0
    %1148 = vmatpush2.msra.mxu0 0.0
    %1149 = vmatprep.subr.mxu0 0.0
    %1150 = vmatpush2.msra.mxu0 0.0
    %1151 = vmatprep.subr.mxu0 0.0
    %1152 = vmatpush2.msra.mxu0 0.0
    %1153 = vmatprep.subr.mxu0 0.0
    %1154 = vmatpush2.msra.mxu0 0.0
    %1155 = vmatprep.subr.mxu0 0.0
    %1156 = vmatpush2.msra.mxu0 0.0
    %1157 = vmatprep.subr.mxu0 0.0
    %1158 = vmatpush2.msra.mxu0 0.0
    %1159 = vmatprep.subr.mxu0 0.0
    %1160 = vmatpush2.msra.mxu0 0.0
    %1161 = vmatprep.subr.mxu0 0.0
    %1162 = vmatpush2.msra.mxu0 0.0
    %1163 = vmatprep.subr.mxu0 0.0
    %1164 = vmatpush2.msra.mxu0 0.0
    %1165 = vmatprep.subr.mxu0 0.0
    %1166 = vmatpush2.msra.mxu0 0.0
    %1167 = vmatprep.subr.mxu0 0.0
    %1168 = vmatpush2.msra.mxu0 0.0
    %1169 = vmatprep.subr.mxu0 0.0
    %1170 = vmatpush2.msra.mxu0 0.0
    %1171 = vmatprep.subr.mxu0 0.0
    %1172 = vmatpush2.msra.mxu0 0.0
    %1173 = vmatprep.subr.mxu0 0.0
    %1174 = vmatpush2.msra.mxu0 0.0
    %1175 = vmatprep.subr.mxu0 0.0
    %1176 = vmatpush2.msra.mxu0 0.0
    %1177 = vmatprep.subr.mxu0 0.0
    %1178 = vmatpush2.msra.mxu0 0.0
    %1179 = vmatprep.mubr.f32.mxu0 0.0
    %1180 = vmatmul.mubr.f32.gmra.mxu0 %v1104
    %v1181 = vpop.f32.mrf.mxu0
    %v1182 = vadd.f32 %v1101, %v1181
    %v1183 = vpop.f32.mrf.mxu0
    %1184 = vmatprep.mubr.f32.mxu0 0.0
    %1185 = vmatmul.mubr.f32.gmra.mxu0 %v1107
    %v1186 = vpop.f32.mrf.mxu0
    %v1187 = vadd.f32 %v1101, %v1186
    %v1188 = vpop.f32.mrf.mxu0
    %1189 = vmatprep.mubr.f32.mxu0 0.0
    %1190 = vmatmul.mubr.f32.gmra.mxu0 %v1110
    %v1191 = vpop.f32.mrf.mxu0
    %v1192 = vadd.f32 %v1101, %v1191
    %v1193 = vpop.f32.mrf.mxu0
    %1194 = vmatprep.mubr.f32.mxu0 0.0
    %1195 = vmatmul.mubr.f32.gmra.mxu0 %v1113
    %v1196 = vpop.f32.mrf.mxu0
    %v1197 = vadd.f32 %v1101, %v1196
    %v1198 = vpop.f32.mrf.mxu0
    %1199 = vdwg.mxu0
    %v1200 = vmax.f32 %v1182, 0.0
    %v1201 = vmax.f32 %v1187, 0.0
    %v1202 = vmax.f32 %v1192, 0.0
    %v1203 = vmax.f32 %v1197, 0.0
    %v1204 = vld [vmem:[%s12] sm:$0xff]
    %v1205 = vld [vmem:[%s12 + $0x8] sm:$0xff]
    %v1206 = vld [vmem:[%s12 + $0x10] sm:$0xff]
    %v1207 = vld [vmem:[%s12 + $0x18] sm:$0xff]
    %v1208 = vld [vmem:[%s13] sm:$0x1]
    %v1210 = vlaneseq
    %v1211 = vshrl.u32 %v1210, 7
    %v1212 = vsub.s32 0, %v1211
    %v1213 = vrot.slane %v1208, %v1212
    %v1216 = vsel %vm879, %v1200, 0
    %v1219 = vsel %vm879, %v1201, 0
    %v1222 = vsel %vm879, %v1202, 0
    %v1225 = vsel %vm879, %v1203, 0
    %1227 = vmatprep.subr.mxu0 0.0
    %1228 = vmatpush1.msra.mxu0 0.0
    %1229 = vmatprep.subr.mxu0 0.0
    %1230 = vmatpush1.msra.mxu0 0.0
    %1231 = vmatprep.subr.mxu0 0.0
    %1232 = vmatpush1.msra.mxu0 0.0
    %1233 = vmatprep.subr.mxu0 0.0
    %1234 = vmatpush1.msra.mxu0 0.0
    %1235 = vmatprep.subr.mxu0 0.0
    %1236 = vmatpush1.msra.mxu0 0.0
    %1237 = vmatprep.subr.mxu0 0.0
    %1238 = vmatpush1.msra.mxu0 0.0
    %1239 = vmatprep.subr.mxu0 0.0
    %1240 = vmatpush1.msra.mxu0 0.0
    %1241 = vmatprep.subr.mxu0 0.0
    %1242 = vmatpush1.msra.mxu0 0.0
    %1243 = vmatprep.subr.mxu0 0.0
    %1244 = vmatpush1.msra.mxu0 0.0
    %1245 = vmatprep.subr.mxu0 0.0
    %1246 = vmatpush1.msra.mxu0 0.0
    %1247 = vmatprep.subr.mxu0 0.0
    %1248 = vmatpush1.msra.mxu0 0.0
    %1249 = vmatprep.subr.mxu0 0.0
    %1250 = vmatpush1.msra.mxu0 0.0
    %1251 = vmatprep.subr.mxu0 0.0
    %1252 = vmatpush1.msra.mxu0 %v1207
    %1253 = vmatprep.subr.mxu0 0.0
    %1254 = vmatpush1.msra.mxu0 %v1206
    %1255 = vmatprep.subr.mxu0 0.0
    %1256 = vmatpush1.msra.mxu0 %v1205
    %1257 = vmatprep.subr.mxu0 0.0
    %1258 = vmatpush1.msra.mxu0 %v1204
    %1259 = vmatprep.subr.mxu0 0.0
    %1260 = vmatpush2.msra.mxu0 0.0
    %1261 = vmatprep.subr.mxu0 0.0
    %1262 = vmatpush2.msra.mxu0 0.0
    %1263 = vmatprep.subr.mxu0 0.0
    %1264 = vmatpush2.msra.mxu0 0.0
    %1265 = vmatprep.subr.mxu0 0.0
    %1266 = vmatpush2.msra.mxu0 0.0
    %1267 = vmatprep.subr.mxu0 0.0
    %1268 = vmatpush2.msra.mxu0 0.0
    %1269 = vmatprep.subr.mxu0 0.0
    %1270 = vmatpush2.msra.mxu0 0.0
    %1271 = vmatprep.subr.mxu0 0.0
    %1272 = vmatpush2.msra.mxu0 0.0
    %1273 = vmatprep.subr.mxu0 0.0
    %1274 = vmatpush2.msra.mxu0 0.0
    %1275 = vmatprep.subr.mxu0 0.0
    %1276 = vmatpush2.msra.mxu0 0.0
    %1277 = vmatprep.subr.mxu0 0.0
    %1278 = vmatpush2.msra.mxu0 0.0
    %1279 = vmatprep.subr.mxu0 0.0
    %1280 = vmatpush2.msra.mxu0 0.0
    %1281 = vmatprep.subr.mxu0 0.0
    %1282 = vmatpush2.msra.mxu0 0.0
    %1283 = vmatprep.subr.mxu0 0.0
    %1284 = vmatpush2.msra.mxu0 0.0
    %1285 = vmatprep.subr.mxu0 0.0
    %1286 = vmatpush2.msra.mxu0 0.0
    %1287 = vmatprep.subr.mxu0 0.0
    %1288 = vmatpush2.msra.mxu0 0.0
    %1289 = vmatprep.subr.mxu0 0.0
    %1290 = vmatpush2.msra.mxu0 0.0
    %1291 = vmatprep.mubr.f32.mxu0 0.0
    %1292 = vmatmul.mubr.f32.gmra.mxu0 %v1216
    %v1293 = vpop.f32.mrf.mxu0
    %v1294 = vadd.f32 %v1213, %v1293
    %v1295 = vpop.f32.mrf.mxu0
    %1296 = vmatprep.mubr.f32.mxu0 0.0
    %1297 = vmatmul.mubr.f32.gmra.mxu0 %v1219
    %v1298 = vpop.f32.mrf.mxu0
    %v1299 = vadd.f32 %v1213, %v1298
    %v1300 = vpop.f32.mrf.mxu0
    %1301 = vmatprep.mubr.f32.mxu0 0.0
    %1302 = vmatmul.mubr.f32.gmra.mxu0 %v1222
    %v1303 = vpop.f32.mrf.mxu0
    %v1304 = vadd.f32 %v1213, %v1303
    %v1305 = vpop.f32.mrf.mxu0
    %1306 = vmatprep.mubr.f32.mxu0 0.0
    %1307 = vmatmul.mubr.f32.gmra.mxu0 %v1225
    %v1308 = vpop.f32.mrf.mxu0
    %v1309 = vadd.f32 %v1213, %v1308
    %v1310 = vpop.f32.mrf.mxu0
    %1311 = vdwg.mxu0
    %1312 = vst [vmem:[#allocation2] sm:$0xff] %v1294
    %1313 = vst [vmem:[#allocation2 + $0x8] sm:$0xff] %v1299
    %1314 = vst [vmem:[#allocation2 + $0x10] sm:$0xff] %v1304
    %1315 = vst [vmem:[#allocation2 + $0x18] sm:$0xff] %v1309
    // Predicated region
    $region58: #{tpu_custom_call.1} parent=1 // pred_check
      _
    $region59: #{tpu_custom_call.1} parent=1 // pred_check_branch
      %1317 = sbr.rel (0) target = $region61
    $region60: #{tpu_custom_call.1} parent=1 // pred_region
      %s1319 = ssub.s32 512, 512
      %1320 = vsyncadd [#allocation3], %s1319
      %s1321 = sshll.u32 [#allocation2], 4
      %s1322 = int_to_ptr.vmem [resolvable:$true] %s1321
      %1327 = dma.vmem_to_hbm [thread:$0]  %s1322, 512, %s14, [#allocation3], 128, 128, 8
    $region61: #{tpu_custom_call.1} parent=1 // pred_fallthru
      _
    // Predicated region
    $region62: #{tpu_custom_call.1} parent=1 // pred_check
      _
    $region63: #{tpu_custom_call.1} parent=1 // pred_check_branch
      %1329 = sbr.rel (0) target = $region65
    $region64: #{tpu_custom_call.1} parent=1 // pred_region
      %1330 = dma.done [#allocation3], 512
    $region65: #{tpu_custom_call.1} parent=1 // pred_fallthru
      _
    %1331 = vsyncpa [#allocation3], 1

</llo_original>
